<compile_context>
chip_gen: v6e
topology: v6e:2x2x1
jax: 0.10.0
libtpu: 0.0.40
codegen_flags: <defaults>
</compile_context>

<pallas_src>
import jax
import jax.numpy as jnp
from jax.experimental import pallas as pl
from jax.experimental.pallas import tpu as pltpu


def _make_attn_kernel(*, scale, has_prev, has_g, relu_squared):
    """Build the fused attention kernel for a given static configuration."""

    def kernel(*refs):
        idx = 0
        q_ref = refs[idx]; idx += 1
        k_ref = refs[idx]; idx += 1
        v_ref = refs[idx]; idx += 1
        prev_ref = None
        g_ref = None
        if has_prev:
            prev_ref = refs[idx]; idx += 1
        if has_g:
            g_ref = refs[idx]; idx += 1
        out_ref, attn_w_ref, attn_s_ref = refs[idx], refs[idx + 1], refs[idx + 2]

        q = q_ref[...].astype(jnp.float32)   # (B, L, d_k)
        k = k_ref[...].astype(jnp.float32)   # (B, d_k, S)
        v = v_ref[...].astype(jnp.float32)   # (B, S, d_v)

        # attn_scores = (q @ k) * scale                       -> (B, L, S)
        scores = jnp.einsum("bld,bds->bls", q, k,
                            preferred_element_type=jnp.float32) * scale
        if has_prev:
            scores = scores + prev_ref[...].astype(jnp.float32)

        # TODO(synk): attn_mask / key_padding_mask masking, RNNAttentionScore
        # (rnn_matrix) and the adapter branch are not implemented (defaults).
        attn_s_ref[...] = scores.astype(attn_s_ref.dtype)

        if relu_squared:
            w = jnp.maximum(scores, 0.0)
            w = w * w
        else:
            m = jnp.max(scores, axis=-1, keepdims=True)
            e = jnp.exp(scores - m)
            w = e / jnp.sum(e, axis=-1, keepdims=True)
        attn_w_ref[...] = w.astype(attn_w_ref.dtype)

        # attn_dropout is identity in eval mode.
        # TODO(synk): training-mode dropout (random mask) not implemented.

        out = jnp.einsum("bls,bsv->blv", w, v,
                         preferred_element_type=jnp.float32)   # (B, L, d_v)
        if has_g:
            out = out * g_ref[...].astype(jnp.float32)
        out_ref[...] = out.astype(out_ref.dtype)

    return kernel


def scaled_dot_product_attention(q, k, v, g=None, prev=None, *,
                                 scale=None, relu_squared=False, gau=False,
                                 bh_block=None, vmem_budget_bytes=16 << 20):
    """Fused scaled dot-product attention.

    Shapes (PyTorch-module layout):
      q    : (bs, n_heads, q_len, d_k)
      k    : (bs, n_heads, d_k, seq_len)
      v    : (bs, n_heads, seq_len, d_v)
      g    : (bs, n_heads, q_len, d_v)        (used only when gau=True)
      prev : (bs, n_heads, q_len, seq_len)    (residual attention scores)

    Returns (output, attn_weights, attn_scores, weight_u).
    """
    bs, n_heads, q_len, d_k = q.shape
    assert k.shape == (bs, n_heads, d_k, k.shape[-1])
    seq_len = k.shape[-1]
    d_v = v.shape[-1]
    assert v.shape == (bs, n_heads, seq_len, d_v)

    if scale is None:
        scale = float(d_k) ** -0.5
    scale = float(scale)

    has_prev = prev is not None
    has_g = bool(gau) and (g is not None)

    # Flatten (batch, head) into a single axis.
    B = bs * n_heads
    q2 = q.reshape(B, q_len, d_k)
    k2 = k.reshape(B, d_k, seq_len)
    v2 = v.reshape(B, seq_len, d_v)
    prev2 = prev.reshape(B, q_len, seq_len) if has_prev else None
    g2 = g.reshape(B, q_len, d_v) if has_g else None

    # Pick how many (batch*head) slices each grid step handles: as many as fit
    # a VMEM budget (double-buffered, f32) so each step carries a big tile and
    # per-step pipeline overhead is amortized.
    per_head_f32 = (q_len * d_k + d_k * seq_len + seq_len * d_v   # inputs
                    + q_len * d_v + 2 * q_len * seq_len           # outputs
                    + (q_len * seq_len if has_prev else 0)
                    + (q_len * d_v if has_g else 0))
    per_head_bytes = max(per_head_f32 * 4 * 2, 1)
    if bh_block is None:
        bh_block = max(1, min(B, vmem_budget_bytes // per_head_bytes))
    bh_block = int(min(bh_block, B))

    B_pad = pl.cdiv(B, bh_block) * bh_block
    if B_pad != B:
        pad = ((0, B_pad - B), (0, 0), (0, 0))
        q2 = jnp.pad(q2, pad)
        k2 = jnp.pad(k2, pad)
        v2 = jnp.pad(v2, pad)
        if has_prev:
            prev2 = jnp.pad(prev2, pad)
        if has_g:
            g2 = jnp.pad(g2, pad)

    grid = (B_pad // bh_block,)
    bmap = lambda i: (i, 0, 0)

    in_specs = [
        pl.BlockSpec((bh_block, q_len, d_k), bmap),
        pl.BlockSpec((bh_block, d_k, seq_len), bmap),
        pl.BlockSpec((bh_block, seq_len, d_v), bmap),
    ]
    inputs = [q2, k2, v2]
    if has_prev:
        in_specs.append(pl.BlockSpec((bh_block, q_len, seq_len), bmap))
        inputs.append(prev2)
    if has_g:
        in_specs.append(pl.BlockSpec((bh_block, q_len, d_v), bmap))
        inputs.append(g2)

    out_shape = (
        jax.ShapeDtypeStruct((B_pad, q_len, d_v), q.dtype),
        jax.ShapeDtypeStruct((B_pad, q_len, seq_len), q.dtype),
        jax.ShapeDtypeStruct((B_pad, q_len, seq_len), q.dtype),
    )
    out_specs = (
        pl.BlockSpec((bh_block, q_len, d_v), bmap),
        pl.BlockSpec((bh_block, q_len, seq_len), bmap),
        pl.BlockSpec((bh_block, q_len, seq_len), bmap),
    )

    kernel = _make_attn_kernel(scale=scale, has_prev=has_prev, has_g=has_g,
                               relu_squared=relu_squared)

    out, attn_w, attn_s = pl.pallas_call(
        kernel,
        out_shape=out_shape,
        grid_spec=pltpu.PrefetchScalarGridSpec(
            num_scalar_prefetch=0,
            grid=grid,
            in_specs=in_specs,
            out_specs=out_specs,
        ),
        compiler_params=pltpu.CompilerParams(
            dimension_semantics=("parallel",)),
    )(*inputs)

    out = out[:B].reshape(bs, n_heads, q_len, d_v)
    attn_w = attn_w[:B].reshape(bs, n_heads, q_len, seq_len)
    attn_s = attn_s[:B].reshape(bs, n_heads, q_len, seq_len)
    weight_u = jnp.zeros((1,), q.dtype)   # matches `torch.zeros([1])`
    return out, attn_w, attn_s, weight_u


# ---------------------------------------------------------------------------
# Pure-JAX reference for sanity checking
# ---------------------------------------------------------------------------
def _ref_attention(q, k, v, g=None, prev=None, *, scale,
                   relu_squared=False, gau=False):
    scores = jnp.einsum("bhld,bhds->bhls", q, k) * scale
    if prev is not None:
        scores = scores + prev
    if relu_squared:
        w = jnp.maximum(scores, 0.0) ** 2
    else:
        w = jax.nn.softmax(scores, axis=-1)
    out = jnp.einsum("bhls,bhsv->bhlv", w, v)
    if gau and g is not None:
        out = g * out
    return out, w, scores


if __name__ == "__main__":
    # d_model=64, n_heads=4 -> head_dim d_k = d_v = 16; small seq lengths.
    bs, n_heads, q_len, seq_len = 2, 4, 8, 8
    d_model = 64
    d_k = d_model // n_heads
    d_v = d_k
    scale = d_k ** (-0.5)

    key = jax.random.PRNGKey(0)
    kq, kk, kv, kg, kp = jax.random.split(key, 5)
    q = jax.random.normal(kq, (bs, n_heads, q_len, d_k), jnp.float32)
    k = jax.random.normal(kk, (bs, n_heads, d_k, seq_len), jnp.float32)
    v = jax.random.normal(kv, (bs, n_heads, seq_len, d_v), jnp.float32)
    g = jax.random.normal(kg, (bs, n_heads, q_len, d_v), jnp.float32)
    prev = jax.random.normal(kp, (bs, n_heads, q_len, seq_len), jnp.float32)

    # Default path: softmax attention, no residual scores, no GAU gating.
    out, attn_w, attn_s, weight_u = scaled_dot_product_attention(
        q, k, v, scale=scale)
    out = jax.block_until_ready(out)
    r_out, r_w, r_s = _ref_attention(q, k, v, scale=scale)
    assert out.shape == (bs, n_heads, q_len, d_v)
    assert attn_w.shape == (bs, n_heads, q_len, seq_len)
    assert attn_s.shape == (bs, n_heads, q_len, seq_len)
    assert weight_u.shape == (1,)
    assert jnp.allclose(out, r_out, atol=1e-3, rtol=1e-3), "output mismatch"
    assert jnp.allclose(attn_w, r_w, atol=1e-3, rtol=1e-3), "weights mismatch"
    assert jnp.allclose(attn_s, r_s, atol=1e-3, rtol=1e-3), "scores mismatch"

    # Residual-attention (prev) + reluSquared + GAU gating path.
    out2, w2, s2, _ = scaled_dot_product_attention(
        q, k, v, g=g, prev=prev, scale=scale, relu_squared=True, gau=True)
    out2 = jax.block_until_ready(out2)
    r_out2, r_w2, r_s2 = _ref_attention(q, k, v, g=g, prev=prev, scale=scale,
                                        relu_squared=True, gau=True)
    assert jnp.allclose(out2, r_out2, atol=1e-3, rtol=1e-3), "gau/relu2 output mismatch"
    assert jnp.allclose(w2, r_w2, atol=1e-3, rtol=1e-3), "gau/relu2 weights mismatch"
    assert jnp.allclose(s2, r_s2, atol=1e-3, rtol=1e-3), "gau/relu2 scores mismatch"

    print("KERNEL_OK")
</pallas_src>

<mosaic_0001>
module attributes {stable_mosaic.version = 11 : i64} {
  func.func @kernel(%arg0: i32, %arg1: memref<8x8x16xf32, #tpu.memory_space<vmem>>, %arg2: memref<8x16x8xf32, #tpu.memory_space<vmem>>, %arg3: memref<8x8x16xf32, #tpu.memory_space<vmem>>, %arg4: memref<8x8x16xf32, #tpu.memory_space<vmem>>, %arg5: memref<8x8x8xf32, #tpu.memory_space<vmem>>, %arg6: memref<8x8x8xf32, #tpu.memory_space<vmem>>) attributes {dimension_semantics = [#tpu.dimension_semantics<parallel>], iteration_bounds = array<i64: 1>, scalar_prefetch = 0 : i64, scratch_operands = 0 : i64, tpu.core_type = #tpu.core_type<tc>, window_params = [{transform_indices = @transform_0, window_bounds = array<i64: 8, 8, 16>}, {transform_indices = @transform_1, window_bounds = array<i64: 8, 16, 8>}, {transform_indices = @transform_2, window_bounds = array<i64: 8, 8, 16>}, {transform_indices = @transform_3, window_bounds = array<i64: 8, 8, 16>}, {transform_indices = @transform_4, window_bounds = array<i64: 8, 8, 8>}, {transform_indices = @transform_5, window_bounds = array<i64: 8, 8, 8>}]} {
    %c0 = arith.constant 0 : index
    %c0_0 = arith.constant 0 : index
    %c0_1 = arith.constant 0 : index
    %0 = vector.load %arg1[%c0, %c0_0, %c0_1] : memref<8x8x16xf32, #tpu.memory_space<vmem>>, vector<8x8x16xf32>
    %c0_2 = arith.constant 0 : index
    %c0_3 = arith.constant 0 : index
    %c0_4 = arith.constant 0 : index
    %1 = vector.load %arg2[%c0_2, %c0_3, %c0_4] : memref<8x16x8xf32, #tpu.memory_space<vmem>>, vector<8x16x8xf32>
    %c0_5 = arith.constant 0 : index
    %c0_6 = arith.constant 0 : index
    %c0_7 = arith.constant 0 : index
    %2 = vector.load %arg3[%c0_5, %c0_6, %c0_7] : memref<8x8x16xf32, #tpu.memory_space<vmem>>, vector<8x8x16xf32>
    "tpu.trace_start"() <{level = 10 : i32, message = "bld,bds->bls"}> : () -> ()
    %cst = arith.constant dense<0.000000e+00> : vector<8x8x8xf32>
    %3 = tpu.matmul %0, %1, %cst {dimension_numbers = #tpu.dot_dimension_numbers<[2], [1], [1], [2], [0, 0, 0, 1, 1, 2], [0], [0]>} : vector<8x8x16xf32>, vector<8x16x8xf32>, vector<8x8x8xf32> -> vector<8x8x8xf32>
    "tpu.trace_stop"() : () -> ()
    %cst_8 = arith.constant 2.500000e-01 : f32
    %4 = vector.broadcast %cst_8 : f32 to vector<8x8x8xf32>
    %5 = arith.mulf %3, %4 : vector<8x8x8xf32>
    %c0_9 = arith.constant 0 : index
    %c0_10 = arith.constant 0 : index
    %c0_11 = arith.constant 0 : index
    %6 = vector.load %arg6[%c0_9, %c0_10, %c0_11] : memref<8x8x8xf32, #tpu.memory_space<vmem>>, vector<8x8x8xf32>
    tpu.vector_store %arg6[%c0_9, %c0_10, %c0_11], %5 {strides = array<i32>} : memref<8x8x8xf32, #tpu.memory_space<vmem>>, vector<8x8x8xf32>,
    %cst_12 = arith.constant dense<0xFF800000> : vector<8x8xf32>
    %7 = vector.multi_reduction <maximumf>, %5, %cst_12 [2] : vector<8x8x8xf32> to vector<8x8xf32>
    %8 = vector.shape_cast %7 : vector<8x8xf32> to vector<8x8x1xf32>
    %9 = vector.broadcast %8 : vector<8x8x1xf32> to vector<8x8x8xf32>
    %10 = arith.subf %5, %9 : vector<8x8x8xf32>
    %11 = math.exp %10 : vector<8x8x8xf32>
    %cst_13 = arith.constant dense<0.000000e+00> : vector<8x8xf32>
    %12 = vector.multi_reduction <add>, %11, %cst_13 [2] : vector<8x8x8xf32> to vector<8x8xf32>
    %13 = vector.shape_cast %12 : vector<8x8xf32> to vector<8x8x1xf32>
    %14 = vector.broadcast %13 : vector<8x8x1xf32> to vector<8x8x8xf32>
    %15 = arith.divf %11, %14 : vector<8x8x8xf32>
    %c0_14 = arith.constant 0 : index
    %c0_15 = arith.constant 0 : index
    %c0_16 = arith.constant 0 : index
    %16 = vector.load %arg5[%c0_14, %c0_15, %c0_16] : memref<8x8x8xf32, #tpu.memory_space<vmem>>, vector<8x8x8xf32>
    tpu.vector_store %arg5[%c0_14, %c0_15, %c0_16], %15 {strides = array<i32>} : memref<8x8x8xf32, #tpu.memory_space<vmem>>, vector<8x8x8xf32>,
    "tpu.trace_start"() <{level = 10 : i32, message = "bls,bsv->blv"}> : () -> ()
    %cst_17 = arith.constant dense<0.000000e+00> : vector<8x8x16xf32>
    %17 = tpu.matmul %15, %2, %cst_17 {dimension_numbers = #tpu.dot_dimension_numbers<[2], [1], [1], [2], [0, 0, 0, 1, 1, 2], [0], [0]>} : vector<8x8x8xf32>, vector<8x8x16xf32>, vector<8x8x16xf32> -> vector<8x8x16xf32>
    "tpu.trace_stop"() : () -> ()
    %c0_18 = arith.constant 0 : index
    %c0_19 = arith.constant 0 : index
    %c0_20 = arith.constant 0 : index
    %18 = vector.load %arg4[%c0_18, %c0_19, %c0_20] : memref<8x8x16xf32, #tpu.memory_space<vmem>>, vector<8x8x16xf32>
    tpu.vector_store %arg4[%c0_18, %c0_19, %c0_20], %17 {strides = array<i32>} : memref<8x8x16xf32, #tpu.memory_space<vmem>>, vector<8x8x16xf32>,
    return
  }
  func.func @transform_0(%arg0: i32) -> (i32, i32, i32) {
    %c0_i32 = arith.constant 0 : i32
    %c0_i32_0 = arith.constant 0 : i32
    %c0_i32_1 = arith.constant 0 : i32
    return %arg0, %c0_i32, %c0_i32_0 : i32, i32, i32
  }
  func.func @transform_1(%arg0: i32) -> (i32, i32, i32) {
    %c0_i32 = arith.constant 0 : i32
    %c0_i32_0 = arith.constant 0 : i32
    %c0_i32_1 = arith.constant 0 : i32
    return %arg0, %c0_i32, %c0_i32_0 : i32, i32, i32
  }
  func.func @transform_2(%arg0: i32) -> (i32, i32, i32) {
    %c0_i32 = arith.constant 0 : i32
    %c0_i32_0 = arith.constant 0 : i32
    %c0_i32_1 = arith.constant 0 : i32
    return %arg0, %c0_i32, %c0_i32_0 : i32, i32, i32
  }
  func.func @transform_3(%arg0: i32) -> (i32, i32, i32) {
    %c0_i32 = arith.constant 0 : i32
    %c0_i32_0 = arith.constant 0 : i32
    %c0_i32_1 = arith.constant 0 : i32
    return %arg0, %c0_i32, %c0_i32_0 : i32, i32, i32
  }
  func.func @transform_4(%arg0: i32) -> (i32, i32, i32) {
    %c0_i32 = arith.constant 0 : i32
    %c0_i32_0 = arith.constant 0 : i32
    %c0_i32_1 = arith.constant 0 : i32
    return %arg0, %c0_i32, %c0_i32_0 : i32, i32, i32
  }
  func.func @transform_5(%arg0: i32) -> (i32, i32, i32) {
    %c0_i32 = arith.constant 0 : i32
    %c0_i32_0 = arith.constant 0 : i32
    %c0_i32_1 = arith.constant 0 : i32
    return %arg0, %c0_i32, %c0_i32_0 : i32, i32, i32
  }
}

</mosaic_0001>

<llo_original>
// kernel: tpu_custom_call.1
$region0: #{tpu_custom_call.1}
  #allocation0 [shape = 'u32[]', space=smem, size = 0x4, offset = 0x4, fixed_abs, tag = 'smem constant byte address 0x4 - core index']
  #allocation1 [shape = 'u32[144,128]{1,0:T(1,128)}', space=vmem, size = 0x12000, scoped, tag = 'internal scratch']
  %s0 = inlined_call_operand.vmem [shape: f32[8,8,16], index: 0, kind: input, shape index: {}]
  %s1 = inlined_call_operand.vmem [shape: f32[8,16,8], index: 1, kind: input, shape index: {}]
  %s2 = inlined_call_operand.vmem [shape: f32[8,8,16], index: 2, kind: input, shape index: {}]
  %s3 = inlined_call_operand.hbm [shape: f32[8,8,16], index: 3, kind: output, shape index: {0}]
  %s4 = inlined_call_operand.hbm [shape: f32[8,8,8], index: 4, kind: output, shape index: {1}]
  %s5 = inlined_call_operand.hbm [shape: f32[8,8,8], index: 5, kind: output, shape index: {2}]
  %6 = xla_tuple %s3, %s4, %s5
  %s7 = sld [smem:[#allocation0]]
  $region38: #{tpu_custom_call.1} parent=0
    _
  %s9 = ssub.s32 1, %s7
  %s10 = scalar_select 0, %s9, %s7
  $region1: #{tpu_custom_call.1} parent=0
    #allocation2 [shape = 'u8[32768]{0}', space=vmem, size = 0x8000, scoped, tag = 'output window, operand 0, single buffered']
    #allocation3 [shape = 's32[1]{0}', space=sflag, size = 0x4, scoped, tag = 'scoped memory for tpu_custom_call.1']
    #allocation4 [shape = 'u8[32768]{0}', space=vmem, size = 0x8000, scoped, tag = 'output window, operand 1, single buffered']
    #allocation5 [shape = 's32[1]{0}', space=sflag, size = 0x4, scoped, tag = 'scoped memory for tpu_custom_call.1']
    #allocation6 [shape = 'u8[32768]{0}', space=vmem, size = 0x8000, scoped, tag = 'output window, operand 2, single buffered']
    %11 = vsyncpa [#allocation3], 0
    %12 = vsyncpa [#allocation5], 0
    // Predicated region
    $region2: #{tpu_custom_call.1} parent=1 // pred_check
      _
    $region3: #{tpu_custom_call.1} parent=1 // pred_check_branch
      %14 = sbr.rel (0) target = $region5
    $region4: #{tpu_custom_call.1} parent=1 // pred_region
      _
    $region5: #{tpu_custom_call.1} parent=1 // pred_fallthru
      _
    // Predicated region
    $region6: #{tpu_custom_call.1} parent=1 // pred_check
      _
    $region7: #{tpu_custom_call.1} parent=1 // pred_check_branch
      %16 = sbr.rel (0) target = $region9
    $region8: #{tpu_custom_call.1} parent=1 // pred_region
      _
    $region9: #{tpu_custom_call.1} parent=1 // pred_fallthru
      _
    // Predicated region
    $region10: #{tpu_custom_call.1} parent=1 // pred_check
      _
    $region11: #{tpu_custom_call.1} parent=1 // pred_check_branch
      %18 = sbr.rel (0) target = $region13
    $region12: #{tpu_custom_call.1} parent=1 // pred_region
      _
    $region13: #{tpu_custom_call.1} parent=1 // pred_fallthru
      _
    %v19 = vld [vmem:[%s0] sm:$0xff]
    %v20 = vld [vmem:[%s0 + $0x8] sm:$0xff]
    %v21 = vld [vmem:[%s0 + $0x10] sm:$0xff]
    %v22 = vld [vmem:[%s0 + $0x18] sm:$0xff]
    %v23 = vld [vmem:[%s0 + $0x20] sm:$0xff]
    %v24 = vld [vmem:[%s0 + $0x28] sm:$0xff]
    %v25 = vld [vmem:[%s0 + $0x30] sm:$0xff]
    %v26 = vld [vmem:[%s0 + $0x38] sm:$0xff]
    %v27 = vld [vmem:[%s1] sm:$0xff]
    %v28 = vld [vmem:[%s1 + $0x8] sm:$0xff]
    %v29 = vld [vmem:[%s1 + $0x10] sm:$0xff]
    %v30 = vld [vmem:[%s1 + $0x18] sm:$0xff]
    %v31 = vld [vmem:[%s1 + $0x20] sm:$0xff]
    %v32 = vld [vmem:[%s1 + $0x28] sm:$0xff]
    %v33 = vld [vmem:[%s1 + $0x30] sm:$0xff]
    %v34 = vld [vmem:[%s1 + $0x38] sm:$0xff]
    %v35 = vld [vmem:[%s1 + $0x40] sm:$0xff]
    %v36 = vld [vmem:[%s1 + $0x48] sm:$0xff]
    %v37 = vld [vmem:[%s1 + $0x50] sm:$0xff]
    %v38 = vld [vmem:[%s1 + $0x58] sm:$0xff]
    %v39 = vld [vmem:[%s1 + $0x60] sm:$0xff]
    %v40 = vld [vmem:[%s1 + $0x68] sm:$0xff]
    %v41 = vld [vmem:[%s1 + $0x70] sm:$0xff]
    %v42 = vld [vmem:[%s1 + $0x78] sm:$0xff]
    %v43 = vld [vmem:[%s2] sm:$0xff]
    %v44 = vld [vmem:[%s2 + $0x8] sm:$0xff]
    %v45 = vld [vmem:[%s2 + $0x10] sm:$0xff]
    %v46 = vld [vmem:[%s2 + $0x18] sm:$0xff]
    %v47 = vld [vmem:[%s2 + $0x20] sm:$0xff]
    %v48 = vld [vmem:[%s2 + $0x28] sm:$0xff]
    %v49 = vld [vmem:[%s2 + $0x30] sm:$0xff]
    %v50 = vld [vmem:[%s2 + $0x38] sm:$0xff]
    %vm51 = vcmask 130048
    %v53 = vsel %vm51, %v19, 0
    %55 = vmatprep.subr.mxu0 0.0
    %56 = vmatpush1.msra.mxu0 0.0
    %57 = vmatprep.subr.mxu0 0.0
    %58 = vmatpush1.msra.mxu0 0.0
    %59 = vmatprep.subr.mxu0 0.0
    %60 = vmatpush1.msra.mxu0 0.0
    %61 = vmatprep.subr.mxu0 0.0
    %62 = vmatpush1.msra.mxu0 0.0
    %63 = vmatprep.subr.mxu0 0.0
    %64 = vmatpush1.msra.mxu0 0.0
    %65 = vmatprep.subr.mxu0 0.0
    %66 = vmatpush1.msra.mxu0 0.0
    %67 = vmatprep.subr.mxu0 0.0
    %68 = vmatpush1.msra.mxu0 0.0
    %69 = vmatprep.subr.mxu0 0.0
    %70 = vmatpush1.msra.mxu0 0.0
    %71 = vmatprep.subr.mxu0 0.0
    %72 = vmatpush1.msra.mxu0 0.0
    %73 = vmatprep.subr.mxu0 0.0
    %74 = vmatpush1.msra.mxu0 0.0
    %75 = vmatprep.subr.mxu0 0.0
    %76 = vmatpush1.msra.mxu0 0.0
    %77 = vmatprep.subr.mxu0 0.0
    %78 = vmatpush1.msra.mxu0 0.0
    %79 = vmatprep.subr.mxu0 0.0
    %80 = vmatpush1.msra.mxu0 0.0
    %81 = vmatprep.subr.mxu0 0.0
    %82 = vmatpush1.msra.mxu0 0.0
    %83 = vmatprep.subr.mxu0 0.0
    %84 = vmatpush1.msra.mxu0 %v28
    %85 = vmatprep.subr.mxu0 0.0
    %86 = vmatpush1.msra.mxu0 %v27
    %87 = vmatprep.subr.mxu0 0.0
    %88 = vmatpush2.msra.mxu0 0.0
    %89 = vmatprep.subr.mxu0 0.0
    %90 = vmatpush2.msra.mxu0 0.0
    %91 = vmatprep.subr.mxu0 0.0
    %92 = vmatpush2.msra.mxu0 0.0
    %93 = vmatprep.subr.mxu0 0.0
    %94 = vmatpush2.msra.mxu0 0.0
    %95 = vmatprep.subr.mxu0 0.0
    %96 = vmatpush2.msra.mxu0 0.0
    %97 = vmatprep.subr.mxu0 0.0
    %98 = vmatpush2.msra.mxu0 0.0
    %99 = vmatprep.subr.mxu0 0.0
    %100 = vmatpush2.msra.mxu0 0.0
    %101 = vmatprep.subr.mxu0 0.0
    %102 = vmatpush2.msra.mxu0 0.0
    %103 = vmatprep.subr.mxu0 0.0
    %104 = vmatpush2.msra.mxu0 0.0
    %105 = vmatprep.subr.mxu0 0.0
    %106 = vmatpush2.msra.mxu0 0.0
    %107 = vmatprep.subr.mxu0 0.0
    %108 = vmatpush2.msra.mxu0 0.0
    %109 = vmatprep.subr.mxu0 0.0
    %110 = vmatpush2.msra.mxu0 0.0
    %111 = vmatprep.subr.mxu0 0.0
    %112 = vmatpush2.msra.mxu0 0.0
    %113 = vmatprep.subr.mxu0 0.0
    %114 = vmatpush2.msra.mxu0 0.0
    %115 = vmatprep.subr.mxu0 0.0
    %116 = vmatpush2.msra.mxu0 0.0
    %117 = vmatprep.subr.mxu0 0.0
    %118 = vmatpush2.msra.mxu0 0.0
    %119 = vmatprep.mubr.f32.mxu0 0.0
    %120 = vmatmul.mubr.f32.gmra.mxu0 %v53
    %v121 = vpop.f32.mrf.mxu0
    %v122 = vadd.f32 0.0, %v121
    %v123 = vpop.f32.mrf.mxu0
    %124 = vdwg.mxu0
    %v126 = vsel %vm51, %v20, 0
    %128 = vmatprep.subr.mxu0 0.0
    %129 = vmatpush1.msra.mxu0 0.0
    %130 = vmatprep.subr.mxu0 0.0
    %131 = vmatpush1.msra.mxu0 0.0
    %132 = vmatprep.subr.mxu0 0.0
    %133 = vmatpush1.msra.mxu0 0.0
    %134 = vmatprep.subr.mxu0 0.0
    %135 = vmatpush1.msra.mxu0 0.0
    %136 = vmatprep.subr.mxu0 0.0
    %137 = vmatpush1.msra.mxu0 0.0
    %138 = vmatprep.subr.mxu0 0.0
    %139 = vmatpush1.msra.mxu0 0.0
    %140 = vmatprep.subr.mxu0 0.0
    %141 = vmatpush1.msra.mxu0 0.0
    %142 = vmatprep.subr.mxu0 0.0
    %143 = vmatpush1.msra.mxu0 0.0
    %144 = vmatprep.subr.mxu0 0.0
    %145 = vmatpush1.msra.mxu0 0.0
    %146 = vmatprep.subr.mxu0 0.0
    %147 = vmatpush1.msra.mxu0 0.0
    %148 = vmatprep.subr.mxu0 0.0
    %149 = vmatpush1.msra.mxu0 0.0
    %150 = vmatprep.subr.mxu0 0.0
    %151 = vmatpush1.msra.mxu0 0.0
    %152 = vmatprep.subr.mxu0 0.0
    %153 = vmatpush1.msra.mxu0 0.0
    %154 = vmatprep.subr.mxu0 0.0
    %155 = vmatpush1.msra.mxu0 0.0
    %156 = vmatprep.subr.mxu0 0.0
    %157 = vmatpush1.msra.mxu0 %v30
    %158 = vmatprep.subr.mxu0 0.0
    %159 = vmatpush1.msra.mxu0 %v29
    %160 = vmatprep.subr.mxu0 0.0
    %161 = vmatpush2.msra.mxu0 0.0
    %162 = vmatprep.subr.mxu0 0.0
    %163 = vmatpush2.msra.mxu0 0.0
    %164 = vmatprep.subr.mxu0 0.0
    %165 = vmatpush2.msra.mxu0 0.0
    %166 = vmatprep.subr.mxu0 0.0
    %167 = vmatpush2.msra.mxu0 0.0
    %168 = vmatprep.subr.mxu0 0.0
    %169 = vmatpush2.msra.mxu0 0.0
    %170 = vmatprep.subr.mxu0 0.0
    %171 = vmatpush2.msra.mxu0 0.0
    %172 = vmatprep.subr.mxu0 0.0
    %173 = vmatpush2.msra.mxu0 0.0
    %174 = vmatprep.subr.mxu0 0.0
    %175 = vmatpush2.msra.mxu0 0.0
    %176 = vmatprep.subr.mxu0 0.0
    %177 = vmatpush2.msra.mxu0 0.0
    %178 = vmatprep.subr.mxu0 0.0
    %179 = vmatpush2.msra.mxu0 0.0
    %180 = vmatprep.subr.mxu0 0.0
    %181 = vmatpush2.msra.mxu0 0.0
    %182 = vmatprep.subr.mxu0 0.0
    %183 = vmatpush2.msra.mxu0 0.0
    %184 = vmatprep.subr.mxu0 0.0
    %185 = vmatpush2.msra.mxu0 0.0
    %186 = vmatprep.subr.mxu0 0.0
    %187 = vmatpush2.msra.mxu0 0.0
    %188 = vmatprep.subr.mxu0 0.0
    %189 = vmatpush2.msra.mxu0 0.0
    %190 = vmatprep.subr.mxu0 0.0
    %191 = vmatpush2.msra.mxu0 0.0
    %192 = vmatprep.mubr.f32.mxu0 0.0
    %193 = vmatmul.mubr.f32.gmra.mxu0 %v126
    %v194 = vpop.f32.mrf.mxu0
    %v195 = vadd.f32 0.0, %v194
    %v196 = vpop.f32.mrf.mxu0
    %197 = vdwg.mxu0
    %v199 = vsel %vm51, %v21, 0
    %201 = vmatprep.subr.mxu0 0.0
    %202 = vmatpush1.msra.mxu0 0.0
    %203 = vmatprep.subr.mxu0 0.0
    %204 = vmatpush1.msra.mxu0 0.0
    %205 = vmatprep.subr.mxu0 0.0
    %206 = vmatpush1.msra.mxu0 0.0
    %207 = vmatprep.subr.mxu0 0.0
    %208 = vmatpush1.msra.mxu0 0.0
    %209 = vmatprep.subr.mxu0 0.0
    %210 = vmatpush1.msra.mxu0 0.0
    %211 = vmatprep.subr.mxu0 0.0
    %212 = vmatpush1.msra.mxu0 0.0
    %213 = vmatprep.subr.mxu0 0.0
    %214 = vmatpush1.msra.mxu0 0.0
    %215 = vmatprep.subr.mxu0 0.0
    %216 = vmatpush1.msra.mxu0 0.0
    %217 = vmatprep.subr.mxu0 0.0
    %218 = vmatpush1.msra.mxu0 0.0
    %219 = vmatprep.subr.mxu0 0.0
    %220 = vmatpush1.msra.mxu0 0.0
    %221 = vmatprep.subr.mxu0 0.0
    %222 = vmatpush1.msra.mxu0 0.0
    %223 = vmatprep.subr.mxu0 0.0
    %224 = vmatpush1.msra.mxu0 0.0
    %225 = vmatprep.subr.mxu0 0.0
    %226 = vmatpush1.msra.mxu0 0.0
    %227 = vmatprep.subr.mxu0 0.0
    %228 = vmatpush1.msra.mxu0 0.0
    %229 = vmatprep.subr.mxu0 0.0
    %230 = vmatpush1.msra.mxu0 %v32
    %231 = vmatprep.subr.mxu0 0.0
    %232 = vmatpush1.msra.mxu0 %v31
    %233 = vmatprep.subr.mxu0 0.0
    %234 = vmatpush2.msra.mxu0 0.0
    %235 = vmatprep.subr.mxu0 0.0
    %236 = vmatpush2.msra.mxu0 0.0
    %237 = vmatprep.subr.mxu0 0.0
    %238 = vmatpush2.msra.mxu0 0.0
    %239 = vmatprep.subr.mxu0 0.0
    %240 = vmatpush2.msra.mxu0 0.0
    %241 = vmatprep.subr.mxu0 0.0
    %242 = vmatpush2.msra.mxu0 0.0
    %243 = vmatprep.subr.mxu0 0.0
    %244 = vmatpush2.msra.mxu0 0.0
    %245 = vmatprep.subr.mxu0 0.0
    %246 = vmatpush2.msra.mxu0 0.0
    %247 = vmatprep.subr.mxu0 0.0
    %248 = vmatpush2.msra.mxu0 0.0
    %249 = vmatprep.subr.mxu0 0.0
    %250 = vmatpush2.msra.mxu0 0.0
    %251 = vmatprep.subr.mxu0 0.0
    %252 = vmatpush2.msra.mxu0 0.0
    %253 = vmatprep.subr.mxu0 0.0
    %254 = vmatpush2.msra.mxu0 0.0
    %255 = vmatprep.subr.mxu0 0.0
    %256 = vmatpush2.msra.mxu0 0.0
    %257 = vmatprep.subr.mxu0 0.0
    %258 = vmatpush2.msra.mxu0 0.0
    %259 = vmatprep.subr.mxu0 0.0
    %260 = vmatpush2.msra.mxu0 0.0
    %261 = vmatprep.subr.mxu0 0.0
    %262 = vmatpush2.msra.mxu0 0.0
    %263 = vmatprep.subr.mxu0 0.0
    %264 = vmatpush2.msra.mxu0 0.0
    %265 = vmatprep.mubr.f32.mxu0 0.0
    %266 = vmatmul.mubr.f32.gmra.mxu0 %v199
    %v267 = vpop.f32.mrf.mxu0
    %v268 = vadd.f32 0.0, %v267
    %v269 = vpop.f32.mrf.mxu0
    %270 = vdwg.mxu0
    %v272 = vsel %vm51, %v22, 0
    %274 = vmatprep.subr.mxu0 0.0
    %275 = vmatpush1.msra.mxu0 0.0
    %276 = vmatprep.subr.mxu0 0.0
    %277 = vmatpush1.msra.mxu0 0.0
    %278 = vmatprep.subr.mxu0 0.0
    %279 = vmatpush1.msra.mxu0 0.0
    %280 = vmatprep.subr.mxu0 0.0
    %281 = vmatpush1.msra.mxu0 0.0
    %282 = vmatprep.subr.mxu0 0.0
    %283 = vmatpush1.msra.mxu0 0.0
    %284 = vmatprep.subr.mxu0 0.0
    %285 = vmatpush1.msra.mxu0 0.0
    %286 = vmatprep.subr.mxu0 0.0
    %287 = vmatpush1.msra.mxu0 0.0
    %288 = vmatprep.subr.mxu0 0.0
    %289 = vmatpush1.msra.mxu0 0.0
    %290 = vmatprep.subr.mxu0 0.0
    %291 = vmatpush1.msra.mxu0 0.0
    %292 = vmatprep.subr.mxu0 0.0
    %293 = vmatpush1.msra.mxu0 0.0
    %294 = vmatprep.subr.mxu0 0.0
    %295 = vmatpush1.msra.mxu0 0.0
    %296 = vmatprep.subr.mxu0 0.0
    %297 = vmatpush1.msra.mxu0 0.0
    %298 = vmatprep.subr.mxu0 0.0
    %299 = vmatpush1.msra.mxu0 0.0
    %300 = vmatprep.subr.mxu0 0.0
    %301 = vmatpush1.msra.mxu0 0.0
    %302 = vmatprep.subr.mxu0 0.0
    %303 = vmatpush1.msra.mxu0 %v34
    %304 = vmatprep.subr.mxu0 0.0
    %305 = vmatpush1.msra.mxu0 %v33
    %306 = vmatprep.subr.mxu0 0.0
    %307 = vmatpush2.msra.mxu0 0.0
    %308 = vmatprep.subr.mxu0 0.0
    %309 = vmatpush2.msra.mxu0 0.0
    %310 = vmatprep.subr.mxu0 0.0
    %311 = vmatpush2.msra.mxu0 0.0
    %312 = vmatprep.subr.mxu0 0.0
    %313 = vmatpush2.msra.mxu0 0.0
    %314 = vmatprep.subr.mxu0 0.0
    %315 = vmatpush2.msra.mxu0 0.0
    %316 = vmatprep.subr.mxu0 0.0
    %317 = vmatpush2.msra.mxu0 0.0
    %318 = vmatprep.subr.mxu0 0.0
    %319 = vmatpush2.msra.mxu0 0.0
    %320 = vmatprep.subr.mxu0 0.0
    %321 = vmatpush2.msra.mxu0 0.0
    %322 = vmatprep.subr.mxu0 0.0
    %323 = vmatpush2.msra.mxu0 0.0
    %324 = vmatprep.subr.mxu0 0.0
    %325 = vmatpush2.msra.mxu0 0.0
    %326 = vmatprep.subr.mxu0 0.0
    %327 = vmatpush2.msra.mxu0 0.0
    %328 = vmatprep.subr.mxu0 0.0
    %329 = vmatpush2.msra.mxu0 0.0
    %330 = vmatprep.subr.mxu0 0.0
    %331 = vmatpush2.msra.mxu0 0.0
    %332 = vmatprep.subr.mxu0 0.0
    %333 = vmatpush2.msra.mxu0 0.0
    %334 = vmatprep.subr.mxu0 0.0
    %335 = vmatpush2.msra.mxu0 0.0
    %336 = vmatprep.subr.mxu0 0.0
    %337 = vmatpush2.msra.mxu0 0.0
    %338 = vmatprep.mubr.f32.mxu0 0.0
    %339 = vmatmul.mubr.f32.gmra.mxu0 %v272
    %v340 = vpop.f32.mrf.mxu0
    %v341 = vadd.f32 0.0, %v340
    %v342 = vpop.f32.mrf.mxu0
    %343 = vdwg.mxu0
    %v345 = vsel %vm51, %v23, 0
    %347 = vmatprep.subr.mxu0 0.0
    %348 = vmatpush1.msra.mxu0 0.0
    %349 = vmatprep.subr.mxu0 0.0
    %350 = vmatpush1.msra.mxu0 0.0
    %351 = vmatprep.subr.mxu0 0.0
    %352 = vmatpush1.msra.mxu0 0.0
    %353 = vmatprep.subr.mxu0 0.0
    %354 = vmatpush1.msra.mxu0 0.0
    %355 = vmatprep.subr.mxu0 0.0
    %356 = vmatpush1.msra.mxu0 0.0
    %357 = vmatprep.subr.mxu0 0.0
    %358 = vmatpush1.msra.mxu0 0.0
    %359 = vmatprep.subr.mxu0 0.0
    %360 = vmatpush1.msra.mxu0 0.0
    %361 = vmatprep.subr.mxu0 0.0
    %362 = vmatpush1.msra.mxu0 0.0
    %363 = vmatprep.subr.mxu0 0.0
    %364 = vmatpush1.msra.mxu0 0.0
    %365 = vmatprep.subr.mxu0 0.0
    %366 = vmatpush1.msra.mxu0 0.0
    %367 = vmatprep.subr.mxu0 0.0
    %368 = vmatpush1.msra.mxu0 0.0
    %369 = vmatprep.subr.mxu0 0.0
    %370 = vmatpush1.msra.mxu0 0.0
    %371 = vmatprep.subr.mxu0 0.0
    %372 = vmatpush1.msra.mxu0 0.0
    %373 = vmatprep.subr.mxu0 0.0
    %374 = vmatpush1.msra.mxu0 0.0
    %375 = vmatprep.subr.mxu0 0.0
    %376 = vmatpush1.msra.mxu0 %v36
    %377 = vmatprep.subr.mxu0 0.0
    %378 = vmatpush1.msra.mxu0 %v35
    %379 = vmatprep.subr.mxu0 0.0
    %380 = vmatpush2.msra.mxu0 0.0
    %381 = vmatprep.subr.mxu0 0.0
    %382 = vmatpush2.msra.mxu0 0.0
    %383 = vmatprep.subr.mxu0 0.0
    %384 = vmatpush2.msra.mxu0 0.0
    %385 = vmatprep.subr.mxu0 0.0
    %386 = vmatpush2.msra.mxu0 0.0
    %387 = vmatprep.subr.mxu0 0.0
    %388 = vmatpush2.msra.mxu0 0.0
    %389 = vmatprep.subr.mxu0 0.0
    %390 = vmatpush2.msra.mxu0 0.0
    %391 = vmatprep.subr.mxu0 0.0
    %392 = vmatpush2.msra.mxu0 0.0
    %393 = vmatprep.subr.mxu0 0.0
    %394 = vmatpush2.msra.mxu0 0.0
    %395 = vmatprep.subr.mxu0 0.0
    %396 = vmatpush2.msra.mxu0 0.0
    %397 = vmatprep.subr.mxu0 0.0
    %398 = vmatpush2.msra.mxu0 0.0
    %399 = vmatprep.subr.mxu0 0.0
    %400 = vmatpush2.msra.mxu0 0.0
    %401 = vmatprep.subr.mxu0 0.0
    %402 = vmatpush2.msra.mxu0 0.0
    %403 = vmatprep.subr.mxu0 0.0
    %404 = vmatpush2.msra.mxu0 0.0
    %405 = vmatprep.subr.mxu0 0.0
    %406 = vmatpush2.msra.mxu0 0.0
    %407 = vmatprep.subr.mxu0 0.0
    %408 = vmatpush2.msra.mxu0 0.0
    %409 = vmatprep.subr.mxu0 0.0
    %410 = vmatpush2.msra.mxu0 0.0
    %411 = vmatprep.mubr.f32.mxu0 0.0
    %412 = vmatmul.mubr.f32.gmra.mxu0 %v345
    %v413 = vpop.f32.mrf.mxu0
    %v414 = vadd.f32 0.0, %v413
    %v415 = vpop.f32.mrf.mxu0
    %416 = vdwg.mxu0
    %v418 = vsel %vm51, %v24, 0
    %420 = vmatprep.subr.mxu0 0.0
    %421 = vmatpush1.msra.mxu0 0.0
    %422 = vmatprep.subr.mxu0 0.0
    %423 = vmatpush1.msra.mxu0 0.0
    %424 = vmatprep.subr.mxu0 0.0
    %425 = vmatpush1.msra.mxu0 0.0
    %426 = vmatprep.subr.mxu0 0.0
    %427 = vmatpush1.msra.mxu0 0.0
    %428 = vmatprep.subr.mxu0 0.0
    %429 = vmatpush1.msra.mxu0 0.0
    %430 = vmatprep.subr.mxu0 0.0
    %431 = vmatpush1.msra.mxu0 0.0
    %432 = vmatprep.subr.mxu0 0.0
    %433 = vmatpush1.msra.mxu0 0.0
    %434 = vmatprep.subr.mxu0 0.0
    %435 = vmatpush1.msra.mxu0 0.0
    %436 = vmatprep.subr.mxu0 0.0
    %437 = vmatpush1.msra.mxu0 0.0
    %438 = vmatprep.subr.mxu0 0.0
    %439 = vmatpush1.msra.mxu0 0.0
    %440 = vmatprep.subr.mxu0 0.0
    %441 = vmatpush1.msra.mxu0 0.0
    %442 = vmatprep.subr.mxu0 0.0
    %443 = vmatpush1.msra.mxu0 0.0
    %444 = vmatprep.subr.mxu0 0.0
    %445 = vmatpush1.msra.mxu0 0.0
    %446 = vmatprep.subr.mxu0 0.0
    %447 = vmatpush1.msra.mxu0 0.0
    %448 = vmatprep.subr.mxu0 0.0
    %449 = vmatpush1.msra.mxu0 %v38
    %450 = vmatprep.subr.mxu0 0.0
    %451 = vmatpush1.msra.mxu0 %v37
    %452 = vmatprep.subr.mxu0 0.0
    %453 = vmatpush2.msra.mxu0 0.0
    %454 = vmatprep.subr.mxu0 0.0
    %455 = vmatpush2.msra.mxu0 0.0
    %456 = vmatprep.subr.mxu0 0.0
    %457 = vmatpush2.msra.mxu0 0.0
    %458 = vmatprep.subr.mxu0 0.0
    %459 = vmatpush2.msra.mxu0 0.0
    %460 = vmatprep.subr.mxu0 0.0
    %461 = vmatpush2.msra.mxu0 0.0
    %462 = vmatprep.subr.mxu0 0.0
    %463 = vmatpush2.msra.mxu0 0.0
    %464 = vmatprep.subr.mxu0 0.0
    %465 = vmatpush2.msra.mxu0 0.0
    %466 = vmatprep.subr.mxu0 0.0
    %467 = vmatpush2.msra.mxu0 0.0
    %468 = vmatprep.subr.mxu0 0.0
    %469 = vmatpush2.msra.mxu0 0.0
    %470 = vmatprep.subr.mxu0 0.0
    %471 = vmatpush2.msra.mxu0 0.0
    %472 = vmatprep.subr.mxu0 0.0
    %473 = vmatpush2.msra.mxu0 0.0
    %474 = vmatprep.subr.mxu0 0.0
    %475 = vmatpush2.msra.mxu0 0.0
    %476 = vmatprep.subr.mxu0 0.0
    %477 = vmatpush2.msra.mxu0 0.0
    %478 = vmatprep.subr.mxu0 0.0
    %479 = vmatpush2.msra.mxu0 0.0
    %480 = vmatprep.subr.mxu0 0.0
    %481 = vmatpush2.msra.mxu0 0.0
    %482 = vmatprep.subr.mxu0 0.0
    %483 = vmatpush2.msra.mxu0 0.0
    %484 = vmatprep.mubr.f32.mxu0 0.0
    %485 = vmatmul.mubr.f32.gmra.mxu0 %v418
    %v486 = vpop.f32.mrf.mxu0
    %v487 = vadd.f32 0.0, %v486
    %v488 = vpop.f32.mrf.mxu0
    %489 = vdwg.mxu0
    %v491 = vsel %vm51, %v25, 0
    %493 = vmatprep.subr.mxu0 0.0
    %494 = vmatpush1.msra.mxu0 0.0
    %495 = vmatprep.subr.mxu0 0.0
    %496 = vmatpush1.msra.mxu0 0.0
    %497 = vmatprep.subr.mxu0 0.0
    %498 = vmatpush1.msra.mxu0 0.0
    %499 = vmatprep.subr.mxu0 0.0
    %500 = vmatpush1.msra.mxu0 0.0
    %501 = vmatprep.subr.mxu0 0.0
    %502 = vmatpush1.msra.mxu0 0.0
    %503 = vmatprep.subr.mxu0 0.0
    %504 = vmatpush1.msra.mxu0 0.0
    %505 = vmatprep.subr.mxu0 0.0
    %506 = vmatpush1.msra.mxu0 0.0
    %507 = vmatprep.subr.mxu0 0.0
    %508 = vmatpush1.msra.mxu0 0.0
    %509 = vmatprep.subr.mxu0 0.0
    %510 = vmatpush1.msra.mxu0 0.0
    %511 = vmatprep.subr.mxu0 0.0
    %512 = vmatpush1.msra.mxu0 0.0
    %513 = vmatprep.subr.mxu0 0.0
    %514 = vmatpush1.msra.mxu0 0.0
    %515 = vmatprep.subr.mxu0 0.0
    %516 = vmatpush1.msra.mxu0 0.0
    %517 = vmatprep.subr.mxu0 0.0
    %518 = vmatpush1.msra.mxu0 0.0
    %519 = vmatprep.subr.mxu0 0.0
    %520 = vmatpush1.msra.mxu0 0.0
    %521 = vmatprep.subr.mxu0 0.0
    %522 = vmatpush1.msra.mxu0 %v40
    %523 = vmatprep.subr.mxu0 0.0
    %524 = vmatpush1.msra.mxu0 %v39
    %525 = vmatprep.subr.mxu0 0.0
    %526 = vmatpush2.msra.mxu0 0.0
    %527 = vmatprep.subr.mxu0 0.0
    %528 = vmatpush2.msra.mxu0 0.0
    %529 = vmatprep.subr.mxu0 0.0
    %530 = vmatpush2.msra.mxu0 0.0
    %531 = vmatprep.subr.mxu0 0.0
    %532 = vmatpush2.msra.mxu0 0.0
    %533 = vmatprep.subr.mxu0 0.0
    %534 = vmatpush2.msra.mxu0 0.0
    %535 = vmatprep.subr.mxu0 0.0
    %536 = vmatpush2.msra.mxu0 0.0
    %537 = vmatprep.subr.mxu0 0.0
    %538 = vmatpush2.msra.mxu0 0.0
    %539 = vmatprep.subr.mxu0 0.0
    %540 = vmatpush2.msra.mxu0 0.0
    %541 = vmatprep.subr.mxu0 0.0
    %542 = vmatpush2.msra.mxu0 0.0
    %543 = vmatprep.subr.mxu0 0.0
    %544 = vmatpush2.msra.mxu0 0.0
    %545 = vmatprep.subr.mxu0 0.0
    %546 = vmatpush2.msra.mxu0 0.0
    %547 = vmatprep.subr.mxu0 0.0
    %548 = vmatpush2.msra.mxu0 0.0
    %549 = vmatprep.subr.mxu0 0.0
    %550 = vmatpush2.msra.mxu0 0.0
    %551 = vmatprep.subr.mxu0 0.0
    %552 = vmatpush2.msra.mxu0 0.0
    %553 = vmatprep.subr.mxu0 0.0
    %554 = vmatpush2.msra.mxu0 0.0
    %555 = vmatprep.subr.mxu0 0.0
    %556 = vmatpush2.msra.mxu0 0.0
    %557 = vmatprep.mubr.f32.mxu0 0.0
    %558 = vmatmul.mubr.f32.gmra.mxu0 %v491
    %v559 = vpop.f32.mrf.mxu0
    %v560 = vadd.f32 0.0, %v559
    %v561 = vpop.f32.mrf.mxu0
    %562 = vdwg.mxu0
    %v564 = vsel %vm51, %v26, 0
    %566 = vmatprep.subr.mxu0 0.0
    %567 = vmatpush1.msra.mxu0 0.0
    %568 = vmatprep.subr.mxu0 0.0
    %569 = vmatpush1.msra.mxu0 0.0
    %570 = vmatprep.subr.mxu0 0.0
    %571 = vmatpush1.msra.mxu0 0.0
    %572 = vmatprep.subr.mxu0 0.0
    %573 = vmatpush1.msra.mxu0 0.0
    %574 = vmatprep.subr.mxu0 0.0
    %575 = vmatpush1.msra.mxu0 0.0
    %576 = vmatprep.subr.mxu0 0.0
    %577 = vmatpush1.msra.mxu0 0.0
    %578 = vmatprep.subr.mxu0 0.0
    %579 = vmatpush1.msra.mxu0 0.0
    %580 = vmatprep.subr.mxu0 0.0
    %581 = vmatpush1.msra.mxu0 0.0
    %582 = vmatprep.subr.mxu0 0.0
    %583 = vmatpush1.msra.mxu0 0.0
    %584 = vmatprep.subr.mxu0 0.0
    %585 = vmatpush1.msra.mxu0 0.0
    %586 = vmatprep.subr.mxu0 0.0
    %587 = vmatpush1.msra.mxu0 0.0
    %588 = vmatprep.subr.mxu0 0.0
    %589 = vmatpush1.msra.mxu0 0.0
    %590 = vmatprep.subr.mxu0 0.0
    %591 = vmatpush1.msra.mxu0 0.0
    %592 = vmatprep.subr.mxu0 0.0
    %593 = vmatpush1.msra.mxu0 0.0
    %594 = vmatprep.subr.mxu0 0.0
    %595 = vmatpush1.msra.mxu0 %v42
    %596 = vmatprep.subr.mxu0 0.0
    %597 = vmatpush1.msra.mxu0 %v41
    %598 = vmatprep.subr.mxu0 0.0
    %599 = vmatpush2.msra.mxu0 0.0
    %600 = vmatprep.subr.mxu0 0.0
    %601 = vmatpush2.msra.mxu0 0.0
    %602 = vmatprep.subr.mxu0 0.0
    %603 = vmatpush2.msra.mxu0 0.0
    %604 = vmatprep.subr.mxu0 0.0
    %605 = vmatpush2.msra.mxu0 0.0
    %606 = vmatprep.subr.mxu0 0.0
    %607 = vmatpush2.msra.mxu0 0.0
    %608 = vmatprep.subr.mxu0 0.0
    %609 = vmatpush2.msra.mxu0 0.0
    %610 = vmatprep.subr.mxu0 0.0
    %611 = vmatpush2.msra.mxu0 0.0
    %612 = vmatprep.subr.mxu0 0.0
    %613 = vmatpush2.msra.mxu0 0.0
    %614 = vmatprep.subr.mxu0 0.0
    %615 = vmatpush2.msra.mxu0 0.0
    %616 = vmatprep.subr.mxu0 0.0
    %617 = vmatpush2.msra.mxu0 0.0
    %618 = vmatprep.subr.mxu0 0.0
    %619 = vmatpush2.msra.mxu0 0.0
    %620 = vmatprep.subr.mxu0 0.0
    %621 = vmatpush2.msra.mxu0 0.0
    %622 = vmatprep.subr.mxu0 0.0
    %623 = vmatpush2.msra.mxu0 0.0
    %624 = vmatprep.subr.mxu0 0.0
    %625 = vmatpush2.msra.mxu0 0.0
    %626 = vmatprep.subr.mxu0 0.0
    %627 = vmatpush2.msra.mxu0 0.0
    %628 = vmatprep.subr.mxu0 0.0
    %629 = vmatpush2.msra.mxu0 0.0
    %630 = vmatprep.mubr.f32.mxu0 0.0
    %631 = vmatmul.mubr.f32.gmra.mxu0 %v564
    %v632 = vpop.f32.mrf.mxu0
    %v633 = vadd.f32 0.0, %v632
    %v634 = vpop.f32.mrf.mxu0
    %635 = vdwg.mxu0
    %v636 = vmul.f32 %v122, 0.25
    %v637 = vmul.f32 %v195, 0.25
    %v638 = vmul.f32 %v268, 0.25
    %v639 = vmul.f32 %v341, 0.25
    %v640 = vmul.f32 %v414, 0.25
    %v641 = vmul.f32 %v487, 0.25
    %v642 = vmul.f32 %v560, 0.25
    %v643 = vmul.f32 %v633, 0.25
    %vm644 = vcmask 64512
    %645 = vst.msk [vmem:[#allocation6] sm:$0xff] %vm644, %v636
    %646 = vst.msk [vmem:[#allocation6 + $0x8] sm:$0xff] %vm644, %v637
    %647 = vst.msk [vmem:[#allocation6 + $0x10] sm:$0xff] %vm644, %v638
    %648 = vst.msk [vmem:[#allocation6 + $0x18] sm:$0xff] %vm644, %v639
    %649 = vst.msk [vmem:[#allocation6 + $0x20] sm:$0xff] %vm644, %v640
    %650 = vst.msk [vmem:[#allocation6 + $0x28] sm:$0xff] %vm644, %v641
    %651 = vst.msk [vmem:[#allocation6 + $0x30] sm:$0xff] %vm644, %v642
    %652 = vst.msk [vmem:[#allocation6 + $0x38] sm:$0xff] %vm644, %v643
    %v653 = vsel %vm644, %v636, -inf
    %654 = vmax.xlane.f32.xlu0 %v653
    %v655 = vpop.xlane.xlu0 %654
    %v656 = vsel %vm644, %v637, -inf
    %657 = vmax.xlane.f32.xlu0 %v656
    %v658 = vpop.xlane.xlu0 %657
    %v659 = vsel %vm644, %v638, -inf
    %660 = vmax.xlane.f32.xlu0 %v659
    %v661 = vpop.xlane.xlu0 %660
    %v662 = vsel %vm644, %v639, -inf
    %663 = vmax.xlane.f32.xlu0 %v662
    %v664 = vpop.xlane.xlu0 %663
    %v665 = vsel %vm644, %v640, -inf
    %666 = vmax.xlane.f32.xlu0 %v665
    %v667 = vpop.xlane.xlu0 %666
    %v668 = vsel %vm644, %v641, -inf
    %669 = vmax.xlane.f32.xlu0 %v668
    %v670 = vpop.xlane.xlu0 %669
    %v671 = vsel %vm644, %v642, -inf
    %672 = vmax.xlane.f32.xlu0 %v671
    %v673 = vpop.xlane.xlu0 %672
    %v674 = vsel %vm644, %v643, -inf
    %675 = vmax.xlane.f32.xlu0 %v674
    %v676 = vpop.xlane.xlu0 %675
    %v677 = vsub.f32 %v636, %v655
    %v678 = vsub.f32 %v637, %v658
    %v679 = vsub.f32 %v638, %v661
    %v680 = vsub.f32 %v639, %v664
    %v681 = vsub.f32 %v640, %v667
    %v682 = vsub.f32 %v641, %v670
    %v683 = vsub.f32 %v642, %v673
    %v684 = vsub.f32 %v643, %v676
    %v685 = vmul.f32 %v677, 1.442695
    %v686 = vpow.pop %v685
    %v687 = vmul.f32 %v678, 1.442695
    %v688 = vpow.pop %v687
    %v689 = vmul.f32 %v679, 1.442695
    %v690 = vpow.pop %v689
    %v691 = vmul.f32 %v680, 1.442695
    %v692 = vpow.pop %v691
    %v693 = vmul.f32 %v681, 1.442695
    %v694 = vpow.pop %v693
    %v695 = vmul.f32 %v682, 1.442695
    %v696 = vpow.pop %v695
    %v697 = vmul.f32 %v683, 1.442695
    %v698 = vpow.pop %v697
    %v699 = vmul.f32 %v684, 1.442695
    %v700 = vpow.pop %v699
    %v701 = vsel %vm644, %v686, 0.0
    %702 = vadd.xlane.f32.xlu0 %v701
    %v703 = vpop.xlane.xlu0 %702
    %v704 = vsel %vm644, %v688, 0.0
    %705 = vadd.xlane.f32.xlu0 %v704
    %v706 = vpop.xlane.xlu0 %705
    %v707 = vsel %vm644, %v690, 0.0
    %708 = vadd.xlane.f32.xlu0 %v707
    %v709 = vpop.xlane.xlu0 %708
    %v710 = vsel %vm644, %v692, 0.0
    %711 = vadd.xlane.f32.xlu0 %v710
    %v712 = vpop.xlane.xlu0 %711
    %v713 = vsel %vm644, %v694, 0.0
    %714 = vadd.xlane.f32.xlu0 %v713
    %v715 = vpop.xlane.xlu0 %714
    %v716 = vsel %vm644, %v696, 0.0
    %717 = vadd.xlane.f32.xlu0 %v716
    %v718 = vpop.xlane.xlu0 %717
    %v719 = vsel %vm644, %v698, 0.0
    %720 = vadd.xlane.f32.xlu0 %v719
    %v721 = vpop.xlane.xlu0 %720
    %v722 = vsel %vm644, %v700, 0.0
    %723 = vadd.xlane.f32.xlu0 %v722
    %v724 = vpop.xlane.xlu0 %723
    %v725 = vrcp.pop %v703
    %v726 = vmul.f32 %v686, %v725
    %v727 = vrcp.pop %v706
    %v728 = vmul.f32 %v688, %v727
    %v729 = vrcp.pop %v709
    %v730 = vmul.f32 %v690, %v729
    %v731 = vrcp.pop %v712
    %v732 = vmul.f32 %v692, %v731
    %v733 = vrcp.pop %v715
    %v734 = vmul.f32 %v694, %v733
    %v735 = vrcp.pop %v718
    %v736 = vmul.f32 %v696, %v735
    %v737 = vrcp.pop %v721
    %v738 = vmul.f32 %v698, %v737
    %v739 = vrcp.pop %v724
    %v740 = vmul.f32 %v700, %v739
    %741 = vst.msk [vmem:[#allocation4] sm:$0xff] %vm644, %v726
    %742 = vst.msk [vmem:[#allocation4 + $0x8] sm:$0xff] %vm644, %v728
    %743 = vst.msk [vmem:[#allocation4 + $0x10] sm:$0xff] %vm644, %v730
    %744 = vst.msk [vmem:[#allocation4 + $0x18] sm:$0xff] %vm644, %v732
    %745 = vst.msk [vmem:[#allocation4 + $0x20] sm:$0xff] %vm644, %v734
    %746 = vst.msk [vmem:[#allocation4 + $0x28] sm:$0xff] %vm644, %v736
    %747 = vst.msk [vmem:[#allocation4 + $0x30] sm:$0xff] %vm644, %v738
    %748 = vst.msk [vmem:[#allocation4 + $0x38] sm:$0xff] %vm644, %v740
    %v750 = vsel %vm644, %v726, 0
    %752 = vmatprep.subr.mxu0 0.0
    %753 = vmatpush1.msra.mxu0 0.0
    %754 = vmatprep.subr.mxu0 0.0
    %755 = vmatpush1.msra.mxu0 0.0
    %756 = vmatprep.subr.mxu0 0.0
    %757 = vmatpush1.msra.mxu0 0.0
    %758 = vmatprep.subr.mxu0 0.0
    %759 = vmatpush1.msra.mxu0 0.0
    %760 = vmatprep.subr.mxu0 0.0
    %761 = vmatpush1.msra.mxu0 0.0
    %762 = vmatprep.subr.mxu0 0.0
    %763 = vmatpush1.msra.mxu0 0.0
    %764 = vmatprep.subr.mxu0 0.0
    %765 = vmatpush1.msra.mxu0 0.0
    %766 = vmatprep.subr.mxu0 0.0
    %767 = vmatpush1.msra.mxu0 0.0
    %768 = vmatprep.subr.mxu0 0.0
    %769 = vmatpush1.msra.mxu0 0.0
    %770 = vmatprep.subr.mxu0 0.0
    %771 = vmatpush1.msra.mxu0 0.0
    %772 = vmatprep.subr.mxu0 0.0
    %773 = vmatpush1.msra.mxu0 0.0
    %774 = vmatprep.subr.mxu0 0.0
    %775 = vmatpush1.msra.mxu0 0.0
    %776 = vmatprep.subr.mxu0 0.0
    %777 = vmatpush1.msra.mxu0 0.0
    %778 = vmatprep.subr.mxu0 0.0
    %779 = vmatpush1.msra.mxu0 0.0
    %780 = vmatprep.subr.mxu0 0.0
    %781 = vmatpush1.msra.mxu0 0.0
    %782 = vmatprep.subr.mxu0 0.0
    %783 = vmatpush1.msra.mxu0 %v43
    %784 = vmatprep.subr.mxu0 0.0
    %785 = vmatpush2.msra.mxu0 0.0
    %786 = vmatprep.subr.mxu0 0.0
    %787 = vmatpush2.msra.mxu0 0.0
    %788 = vmatprep.subr.mxu0 0.0
    %789 = vmatpush2.msra.mxu0 0.0
    %790 = vmatprep.subr.mxu0 0.0
    %791 = vmatpush2.msra.mxu0 0.0
    %792 = vmatprep.subr.mxu0 0.0
    %793 = vmatpush2.msra.mxu0 0.0
    %794 = vmatprep.subr.mxu0 0.0
    %795 = vmatpush2.msra.mxu0 0.0
    %796 = vmatprep.subr.mxu0 0.0
    %797 = vmatpush2.msra.mxu0 0.0
    %798 = vmatprep.subr.mxu0 0.0
    %799 = vmatpush2.msra.mxu0 0.0
    %800 = vmatprep.subr.mxu0 0.0
    %801 = vmatpush2.msra.mxu0 0.0
    %802 = vmatprep.subr.mxu0 0.0
    %803 = vmatpush2.msra.mxu0 0.0
    %804 = vmatprep.subr.mxu0 0.0
    %805 = vmatpush2.msra.mxu0 0.0
    %806 = vmatprep.subr.mxu0 0.0
    %807 = vmatpush2.msra.mxu0 0.0
    %808 = vmatprep.subr.mxu0 0.0
    %809 = vmatpush2.msra.mxu0 0.0
    %810 = vmatprep.subr.mxu0 0.0
    %811 = vmatpush2.msra.mxu0 0.0
    %812 = vmatprep.subr.mxu0 0.0
    %813 = vmatpush2.msra.mxu0 0.0
    %814 = vmatprep.subr.mxu0 0.0
    %815 = vmatpush2.msra.mxu0 0.0
    %816 = vmatprep.mubr.f32.mxu0 0.0
    %817 = vmatmul.mubr.f32.gmra.mxu0 %v750
    %v818 = vpop.f32.mrf.mxu0
    %v819 = vadd.f32 0.0, %v818
    %v820 = vpop.f32.mrf.mxu0
    %821 = vdwg.mxu0
    %v823 = vsel %vm644, %v728, 0
    %825 = vmatprep.subr.mxu0 0.0
    %826 = vmatpush1.msra.mxu0 0.0
    %827 = vmatprep.subr.mxu0 0.0
    %828 = vmatpush1.msra.mxu0 0.0
    %829 = vmatprep.subr.mxu0 0.0
    %830 = vmatpush1.msra.mxu0 0.0
    %831 = vmatprep.subr.mxu0 0.0
    %832 = vmatpush1.msra.mxu0 0.0
    %833 = vmatprep.subr.mxu0 0.0
    %834 = vmatpush1.msra.mxu0 0.0
    %835 = vmatprep.subr.mxu0 0.0
    %836 = vmatpush1.msra.mxu0 0.0
    %837 = vmatprep.subr.mxu0 0.0
    %838 = vmatpush1.msra.mxu0 0.0
    %839 = vmatprep.subr.mxu0 0.0
    %840 = vmatpush1.msra.mxu0 0.0
    %841 = vmatprep.subr.mxu0 0.0
    %842 = vmatpush1.msra.mxu0 0.0
    %843 = vmatprep.subr.mxu0 0.0
    %844 = vmatpush1.msra.mxu0 0.0
    %845 = vmatprep.subr.mxu0 0.0
    %846 = vmatpush1.msra.mxu0 0.0
    %847 = vmatprep.subr.mxu0 0.0
    %848 = vmatpush1.msra.mxu0 0.0
    %849 = vmatprep.subr.mxu0 0.0
    %850 = vmatpush1.msra.mxu0 0.0
    %851 = vmatprep.subr.mxu0 0.0
    %852 = vmatpush1.msra.mxu0 0.0
    %853 = vmatprep.subr.mxu0 0.0
    %854 = vmatpush1.msra.mxu0 0.0
    %855 = vmatprep.subr.mxu0 0.0
    %856 = vmatpush1.msra.mxu0 %v44
    %857 = vmatprep.subr.mxu0 0.0
    %858 = vmatpush2.msra.mxu0 0.0
    %859 = vmatprep.subr.mxu0 0.0
    %860 = vmatpush2.msra.mxu0 0.0
    %861 = vmatprep.subr.mxu0 0.0
    %862 = vmatpush2.msra.mxu0 0.0
    %863 = vmatprep.subr.mxu0 0.0
    %864 = vmatpush2.msra.mxu0 0.0
    %865 = vmatprep.subr.mxu0 0.0
    %866 = vmatpush2.msra.mxu0 0.0
    %867 = vmatprep.subr.mxu0 0.0
    %868 = vmatpush2.msra.mxu0 0.0
    %869 = vmatprep.subr.mxu0 0.0
    %870 = vmatpush2.msra.mxu0 0.0
    %871 = vmatprep.subr.mxu0 0.0
    %872 = vmatpush2.msra.mxu0 0.0
    %873 = vmatprep.subr.mxu0 0.0
    %874 = vmatpush2.msra.mxu0 0.0
    %875 = vmatprep.subr.mxu0 0.0
    %876 = vmatpush2.msra.mxu0 0.0
    %877 = vmatprep.subr.mxu0 0.0
    %878 = vmatpush2.msra.mxu0 0.0
    %879 = vmatprep.subr.mxu0 0.0
    %880 = vmatpush2.msra.mxu0 0.0
    %881 = vmatprep.subr.mxu0 0.0
    %882 = vmatpush2.msra.mxu0 0.0
    %883 = vmatprep.subr.mxu0 0.0
    %884 = vmatpush2.msra.mxu0 0.0
    %885 = vmatprep.subr.mxu0 0.0
    %886 = vmatpush2.msra.mxu0 0.0
    %887 = vmatprep.subr.mxu0 0.0
    %888 = vmatpush2.msra.mxu0 0.0
    %889 = vmatprep.mubr.f32.mxu0 0.0
    %890 = vmatmul.mubr.f32.gmra.mxu0 %v823
    %v891 = vpop.f32.mrf.mxu0
    %v892 = vadd.f32 0.0, %v891
    %v893 = vpop.f32.mrf.mxu0
    %894 = vdwg.mxu0
    %v896 = vsel %vm644, %v730, 0
    %898 = vmatprep.subr.mxu0 0.0
    %899 = vmatpush1.msra.mxu0 0.0
    %900 = vmatprep.subr.mxu0 0.0
    %901 = vmatpush1.msra.mxu0 0.0
    %902 = vmatprep.subr.mxu0 0.0
    %903 = vmatpush1.msra.mxu0 0.0
    %904 = vmatprep.subr.mxu0 0.0
    %905 = vmatpush1.msra.mxu0 0.0
    %906 = vmatprep.subr.mxu0 0.0
    %907 = vmatpush1.msra.mxu0 0.0
    %908 = vmatprep.subr.mxu0 0.0
    %909 = vmatpush1.msra.mxu0 0.0
    %910 = vmatprep.subr.mxu0 0.0
    %911 = vmatpush1.msra.mxu0 0.0
    %912 = vmatprep.subr.mxu0 0.0
    %913 = vmatpush1.msra.mxu0 0.0
    %914 = vmatprep.subr.mxu0 0.0
    %915 = vmatpush1.msra.mxu0 0.0
    %916 = vmatprep.subr.mxu0 0.0
    %917 = vmatpush1.msra.mxu0 0.0
    %918 = vmatprep.subr.mxu0 0.0
    %919 = vmatpush1.msra.mxu0 0.0
    %920 = vmatprep.subr.mxu0 0.0
    %921 = vmatpush1.msra.mxu0 0.0
    %922 = vmatprep.subr.mxu0 0.0
    %923 = vmatpush1.msra.mxu0 0.0
    %924 = vmatprep.subr.mxu0 0.0
    %925 = vmatpush1.msra.mxu0 0.0
    %926 = vmatprep.subr.mxu0 0.0
    %927 = vmatpush1.msra.mxu0 0.0
    %928 = vmatprep.subr.mxu0 0.0
    %929 = vmatpush1.msra.mxu0 %v45
    %930 = vmatprep.subr.mxu0 0.0
    %931 = vmatpush2.msra.mxu0 0.0
    %932 = vmatprep.subr.mxu0 0.0
    %933 = vmatpush2.msra.mxu0 0.0
    %934 = vmatprep.subr.mxu0 0.0
    %935 = vmatpush2.msra.mxu0 0.0
    %936 = vmatprep.subr.mxu0 0.0
    %937 = vmatpush2.msra.mxu0 0.0
    %938 = vmatprep.subr.mxu0 0.0
    %939 = vmatpush2.msra.mxu0 0.0
    %940 = vmatprep.subr.mxu0 0.0
    %941 = vmatpush2.msra.mxu0 0.0
    %942 = vmatprep.subr.mxu0 0.0
    %943 = vmatpush2.msra.mxu0 0.0
    %944 = vmatprep.subr.mxu0 0.0
    %945 = vmatpush2.msra.mxu0 0.0
    %946 = vmatprep.subr.mxu0 0.0
    %947 = vmatpush2.msra.mxu0 0.0
    %948 = vmatprep.subr.mxu0 0.0
    %949 = vmatpush2.msra.mxu0 0.0
    %950 = vmatprep.subr.mxu0 0.0
    %951 = vmatpush2.msra.mxu0 0.0
    %952 = vmatprep.subr.mxu0 0.0
    %953 = vmatpush2.msra.mxu0 0.0
    %954 = vmatprep.subr.mxu0 0.0
    %955 = vmatpush2.msra.mxu0 0.0
    %956 = vmatprep.subr.mxu0 0.0
    %957 = vmatpush2.msra.mxu0 0.0
    %958 = vmatprep.subr.mxu0 0.0
    %959 = vmatpush2.msra.mxu0 0.0
    %960 = vmatprep.subr.mxu0 0.0
    %961 = vmatpush2.msra.mxu0 0.0
    %962 = vmatprep.mubr.f32.mxu0 0.0
    %963 = vmatmul.mubr.f32.gmra.mxu0 %v896
    %v964 = vpop.f32.mrf.mxu0
    %v965 = vadd.f32 0.0, %v964
    %v966 = vpop.f32.mrf.mxu0
    %967 = vdwg.mxu0
    %v969 = vsel %vm644, %v732, 0
    %971 = vmatprep.subr.mxu0 0.0
    %972 = vmatpush1.msra.mxu0 0.0
    %973 = vmatprep.subr.mxu0 0.0
    %974 = vmatpush1.msra.mxu0 0.0
    %975 = vmatprep.subr.mxu0 0.0
    %976 = vmatpush1.msra.mxu0 0.0
    %977 = vmatprep.subr.mxu0 0.0
    %978 = vmatpush1.msra.mxu0 0.0
    %979 = vmatprep.subr.mxu0 0.0
    %980 = vmatpush1.msra.mxu0 0.0
    %981 = vmatprep.subr.mxu0 0.0
    %982 = vmatpush1.msra.mxu0 0.0
    %983 = vmatprep.subr.mxu0 0.0
    %984 = vmatpush1.msra.mxu0 0.0
    %985 = vmatprep.subr.mxu0 0.0
    %986 = vmatpush1.msra.mxu0 0.0
    %987 = vmatprep.subr.mxu0 0.0
    %988 = vmatpush1.msra.mxu0 0.0
    %989 = vmatprep.subr.mxu0 0.0
    %990 = vmatpush1.msra.mxu0 0.0
    %991 = vmatprep.subr.mxu0 0.0
    %992 = vmatpush1.msra.mxu0 0.0
    %993 = vmatprep.subr.mxu0 0.0
    %994 = vmatpush1.msra.mxu0 0.0
    %995 = vmatprep.subr.mxu0 0.0
    %996 = vmatpush1.msra.mxu0 0.0
    %997 = vmatprep.subr.mxu0 0.0
    %998 = vmatpush1.msra.mxu0 0.0
    %999 = vmatprep.subr.mxu0 0.0
    %1000 = vmatpush1.msra.mxu0 0.0
    %1001 = vmatprep.subr.mxu0 0.0
    %1002 = vmatpush1.msra.mxu0 %v46
    %1003 = vmatprep.subr.mxu0 0.0
    %1004 = vmatpush2.msra.mxu0 0.0
    %1005 = vmatprep.subr.mxu0 0.0
    %1006 = vmatpush2.msra.mxu0 0.0
    %1007 = vmatprep.subr.mxu0 0.0
    %1008 = vmatpush2.msra.mxu0 0.0
    %1009 = vmatprep.subr.mxu0 0.0
    %1010 = vmatpush2.msra.mxu0 0.0
    %1011 = vmatprep.subr.mxu0 0.0
    %1012 = vmatpush2.msra.mxu0 0.0
    %1013 = vmatprep.subr.mxu0 0.0
    %1014 = vmatpush2.msra.mxu0 0.0
    %1015 = vmatprep.subr.mxu0 0.0
    %1016 = vmatpush2.msra.mxu0 0.0
    %1017 = vmatprep.subr.mxu0 0.0
    %1018 = vmatpush2.msra.mxu0 0.0
    %1019 = vmatprep.subr.mxu0 0.0
    %1020 = vmatpush2.msra.mxu0 0.0
    %1021 = vmatprep.subr.mxu0 0.0
    %1022 = vmatpush2.msra.mxu0 0.0
    %1023 = vmatprep.subr.mxu0 0.0
    %1024 = vmatpush2.msra.mxu0 0.0
    %1025 = vmatprep.subr.mxu0 0.0
    %1026 = vmatpush2.msra.mxu0 0.0
    %1027 = vmatprep.subr.mxu0 0.0
    %1028 = vmatpush2.msra.mxu0 0.0
    %1029 = vmatprep.subr.mxu0 0.0
    %1030 = vmatpush2.msra.mxu0 0.0
    %1031 = vmatprep.subr.mxu0 0.0
    %1032 = vmatpush2.msra.mxu0 0.0
    %1033 = vmatprep.subr.mxu0 0.0
    %1034 = vmatpush2.msra.mxu0 0.0
    %1035 = vmatprep.mubr.f32.mxu0 0.0
    %1036 = vmatmul.mubr.f32.gmra.mxu0 %v969
    %v1037 = vpop.f32.mrf.mxu0
    %v1038 = vadd.f32 0.0, %v1037
    %v1039 = vpop.f32.mrf.mxu0
    %1040 = vdwg.mxu0
    %v1042 = vsel %vm644, %v734, 0
    %1044 = vmatprep.subr.mxu0 0.0
    %1045 = vmatpush1.msra.mxu0 0.0
    %1046 = vmatprep.subr.mxu0 0.0
    %1047 = vmatpush1.msra.mxu0 0.0
    %1048 = vmatprep.subr.mxu0 0.0
    %1049 = vmatpush1.msra.mxu0 0.0
    %1050 = vmatprep.subr.mxu0 0.0
    %1051 = vmatpush1.msra.mxu0 0.0
    %1052 = vmatprep.subr.mxu0 0.0
    %1053 = vmatpush1.msra.mxu0 0.0
    %1054 = vmatprep.subr.mxu0 0.0
    %1055 = vmatpush1.msra.mxu0 0.0
    %1056 = vmatprep.subr.mxu0 0.0
    %1057 = vmatpush1.msra.mxu0 0.0
    %1058 = vmatprep.subr.mxu0 0.0
    %1059 = vmatpush1.msra.mxu0 0.0
    %1060 = vmatprep.subr.mxu0 0.0
    %1061 = vmatpush1.msra.mxu0 0.0
    %1062 = vmatprep.subr.mxu0 0.0
    %1063 = vmatpush1.msra.mxu0 0.0
    %1064 = vmatprep.subr.mxu0 0.0
    %1065 = vmatpush1.msra.mxu0 0.0
    %1066 = vmatprep.subr.mxu0 0.0
    %1067 = vmatpush1.msra.mxu0 0.0
    %1068 = vmatprep.subr.mxu0 0.0
    %1069 = vmatpush1.msra.mxu0 0.0
    %1070 = vmatprep.subr.mxu0 0.0
    %1071 = vmatpush1.msra.mxu0 0.0
    %1072 = vmatprep.subr.mxu0 0.0
    %1073 = vmatpush1.msra.mxu0 0.0
    %1074 = vmatprep.subr.mxu0 0.0
    %1075 = vmatpush1.msra.mxu0 %v47
    %1076 = vmatprep.subr.mxu0 0.0
    %1077 = vmatpush2.msra.mxu0 0.0
    %1078 = vmatprep.subr.mxu0 0.0
    %1079 = vmatpush2.msra.mxu0 0.0
    %1080 = vmatprep.subr.mxu0 0.0
    %1081 = vmatpush2.msra.mxu0 0.0
    %1082 = vmatprep.subr.mxu0 0.0
    %1083 = vmatpush2.msra.mxu0 0.0
    %1084 = vmatprep.subr.mxu0 0.0
    %1085 = vmatpush2.msra.mxu0 0.0
    %1086 = vmatprep.subr.mxu0 0.0
    %1087 = vmatpush2.msra.mxu0 0.0
    %1088 = vmatprep.subr.mxu0 0.0
    %1089 = vmatpush2.msra.mxu0 0.0
    %1090 = vmatprep.subr.mxu0 0.0
    %1091 = vmatpush2.msra.mxu0 0.0
    %1092 = vmatprep.subr.mxu0 0.0
    %1093 = vmatpush2.msra.mxu0 0.0
    %1094 = vmatprep.subr.mxu0 0.0
    %1095 = vmatpush2.msra.mxu0 0.0
    %1096 = vmatprep.subr.mxu0 0.0
    %1097 = vmatpush2.msra.mxu0 0.0
    %1098 = vmatprep.subr.mxu0 0.0
    %1099 = vmatpush2.msra.mxu0 0.0
    %1100 = vmatprep.subr.mxu0 0.0
    %1101 = vmatpush2.msra.mxu0 0.0
    %1102 = vmatprep.subr.mxu0 0.0
    %1103 = vmatpush2.msra.mxu0 0.0
    %1104 = vmatprep.subr.mxu0 0.0
    %1105 = vmatpush2.msra.mxu0 0.0
    %1106 = vmatprep.subr.mxu0 0.0
    %1107 = vmatpush2.msra.mxu0 0.0
    %1108 = vmatprep.mubr.f32.mxu0 0.0
    %1109 = vmatmul.mubr.f32.gmra.mxu0 %v1042
    %v1110 = vpop.f32.mrf.mxu0
    %v1111 = vadd.f32 0.0, %v1110
    %v1112 = vpop.f32.mrf.mxu0
    %1113 = vdwg.mxu0
    %v1115 = vsel %vm644, %v736, 0
    %1117 = vmatprep.subr.mxu0 0.0
    %1118 = vmatpush1.msra.mxu0 0.0
    %1119 = vmatprep.subr.mxu0 0.0
    %1120 = vmatpush1.msra.mxu0 0.0
    %1121 = vmatprep.subr.mxu0 0.0
    %1122 = vmatpush1.msra.mxu0 0.0
    %1123 = vmatprep.subr.mxu0 0.0
    %1124 = vmatpush1.msra.mxu0 0.0
    %1125 = vmatprep.subr.mxu0 0.0
    %1126 = vmatpush1.msra.mxu0 0.0
    %1127 = vmatprep.subr.mxu0 0.0
    %1128 = vmatpush1.msra.mxu0 0.0
    %1129 = vmatprep.subr.mxu0 0.0
    %1130 = vmatpush1.msra.mxu0 0.0
    %1131 = vmatprep.subr.mxu0 0.0
    %1132 = vmatpush1.msra.mxu0 0.0
    %1133 = vmatprep.subr.mxu0 0.0
    %1134 = vmatpush1.msra.mxu0 0.0
    %1135 = vmatprep.subr.mxu0 0.0
    %1136 = vmatpush1.msra.mxu0 0.0
    %1137 = vmatprep.subr.mxu0 0.0
    %1138 = vmatpush1.msra.mxu0 0.0
    %1139 = vmatprep.subr.mxu0 0.0
    %1140 = vmatpush1.msra.mxu0 0.0
    %1141 = vmatprep.subr.mxu0 0.0
    %1142 = vmatpush1.msra.mxu0 0.0
    %1143 = vmatprep.subr.mxu0 0.0
    %1144 = vmatpush1.msra.mxu0 0.0
    %1145 = vmatprep.subr.mxu0 0.0
    %1146 = vmatpush1.msra.mxu0 0.0
    %1147 = vmatprep.subr.mxu0 0.0
    %1148 = vmatpush1.msra.mxu0 %v48
    %1149 = vmatprep.subr.mxu0 0.0
    %1150 = vmatpush2.msra.mxu0 0.0
    %1151 = vmatprep.subr.mxu0 0.0
    %1152 = vmatpush2.msra.mxu0 0.0
    %1153 = vmatprep.subr.mxu0 0.0
    %1154 = vmatpush2.msra.mxu0 0.0
    %1155 = vmatprep.subr.mxu0 0.0
    %1156 = vmatpush2.msra.mxu0 0.0
    %1157 = vmatprep.subr.mxu0 0.0
    %1158 = vmatpush2.msra.mxu0 0.0
    %1159 = vmatprep.subr.mxu0 0.0
    %1160 = vmatpush2.msra.mxu0 0.0
    %1161 = vmatprep.subr.mxu0 0.0
    %1162 = vmatpush2.msra.mxu0 0.0
    %1163 = vmatprep.subr.mxu0 0.0
    %1164 = vmatpush2.msra.mxu0 0.0
    %1165 = vmatprep.subr.mxu0 0.0
    %1166 = vmatpush2.msra.mxu0 0.0
    %1167 = vmatprep.subr.mxu0 0.0
    %1168 = vmatpush2.msra.mxu0 0.0
    %1169 = vmatprep.subr.mxu0 0.0
    %1170 = vmatpush2.msra.mxu0 0.0
    %1171 = vmatprep.subr.mxu0 0.0
    %1172 = vmatpush2.msra.mxu0 0.0
    %1173 = vmatprep.subr.mxu0 0.0
    %1174 = vmatpush2.msra.mxu0 0.0
    %1175 = vmatprep.subr.mxu0 0.0
    %1176 = vmatpush2.msra.mxu0 0.0
    %1177 = vmatprep.subr.mxu0 0.0
    %1178 = vmatpush2.msra.mxu0 0.0
    %1179 = vmatprep.subr.mxu0 0.0
    %1180 = vmatpush2.msra.mxu0 0.0
    %1181 = vmatprep.mubr.f32.mxu0 0.0
    %1182 = vmatmul.mubr.f32.gmra.mxu0 %v1115
    %v1183 = vpop.f32.mrf.mxu0
    %v1184 = vadd.f32 0.0, %v1183
    %v1185 = vpop.f32.mrf.mxu0
    %1186 = vdwg.mxu0
    %v1188 = vsel %vm644, %v738, 0
    %1190 = vmatprep.subr.mxu0 0.0
    %1191 = vmatpush1.msra.mxu0 0.0
    %1192 = vmatprep.subr.mxu0 0.0
    %1193 = vmatpush1.msra.mxu0 0.0
    %1194 = vmatprep.subr.mxu0 0.0
    %1195 = vmatpush1.msra.mxu0 0.0
    %1196 = vmatprep.subr.mxu0 0.0
    %1197 = vmatpush1.msra.mxu0 0.0
    %1198 = vmatprep.subr.mxu0 0.0
    %1199 = vmatpush1.msra.mxu0 0.0
    %1200 = vmatprep.subr.mxu0 0.0
    %1201 = vmatpush1.msra.mxu0 0.0
    %1202 = vmatprep.subr.mxu0 0.0
    %1203 = vmatpush1.msra.mxu0 0.0
    %1204 = vmatprep.subr.mxu0 0.0
    %1205 = vmatpush1.msra.mxu0 0.0
    %1206 = vmatprep.subr.mxu0 0.0
    %1207 = vmatpush1.msra.mxu0 0.0
    %1208 = vmatprep.subr.mxu0 0.0
    %1209 = vmatpush1.msra.mxu0 0.0
    %1210 = vmatprep.subr.mxu0 0.0
    %1211 = vmatpush1.msra.mxu0 0.0
    %1212 = vmatprep.subr.mxu0 0.0
    %1213 = vmatpush1.msra.mxu0 0.0
    %1214 = vmatprep.subr.mxu0 0.0
    %1215 = vmatpush1.msra.mxu0 0.0
    %1216 = vmatprep.subr.mxu0 0.0
    %1217 = vmatpush1.msra.mxu0 0.0
    %1218 = vmatprep.subr.mxu0 0.0
    %1219 = vmatpush1.msra.mxu0 0.0
    %1220 = vmatprep.subr.mxu0 0.0
    %1221 = vmatpush1.msra.mxu0 %v49
    %1222 = vmatprep.subr.mxu0 0.0
    %1223 = vmatpush2.msra.mxu0 0.0
    %1224 = vmatprep.subr.mxu0 0.0
    %1225 = vmatpush2.msra.mxu0 0.0
    %1226 = vmatprep.subr.mxu0 0.0
    %1227 = vmatpush2.msra.mxu0 0.0
    %1228 = vmatprep.subr.mxu0 0.0
    %1229 = vmatpush2.msra.mxu0 0.0
    %1230 = vmatprep.subr.mxu0 0.0
    %1231 = vmatpush2.msra.mxu0 0.0
    %1232 = vmatprep.subr.mxu0 0.0
    %1233 = vmatpush2.msra.mxu0 0.0
    %1234 = vmatprep.subr.mxu0 0.0
    %1235 = vmatpush2.msra.mxu0 0.0
    %1236 = vmatprep.subr.mxu0 0.0
    %1237 = vmatpush2.msra.mxu0 0.0
    %1238 = vmatprep.subr.mxu0 0.0
    %1239 = vmatpush2.msra.mxu0 0.0
    %1240 = vmatprep.subr.mxu0 0.0
    %1241 = vmatpush2.msra.mxu0 0.0
    %1242 = vmatprep.subr.mxu0 0.0
    %1243 = vmatpush2.msra.mxu0 0.0
    %1244 = vmatprep.subr.mxu0 0.0
    %1245 = vmatpush2.msra.mxu0 0.0
    %1246 = vmatprep.subr.mxu0 0.0
    %1247 = vmatpush2.msra.mxu0 0.0
    %1248 = vmatprep.subr.mxu0 0.0
    %1249 = vmatpush2.msra.mxu0 0.0
    %1250 = vmatprep.subr.mxu0 0.0
    %1251 = vmatpush2.msra.mxu0 0.0
    %1252 = vmatprep.subr.mxu0 0.0
    %1253 = vmatpush2.msra.mxu0 0.0
    %1254 = vmatprep.mubr.f32.mxu0 0.0
    %1255 = vmatmul.mubr.f32.gmra.mxu0 %v1188
    %v1256 = vpop.f32.mrf.mxu0
    %v1257 = vadd.f32 0.0, %v1256
    %v1258 = vpop.f32.mrf.mxu0
    %1259 = vdwg.mxu0
    %v1261 = vsel %vm644, %v740, 0
    %1263 = vmatprep.subr.mxu0 0.0
    %1264 = vmatpush1.msra.mxu0 0.0
    %1265 = vmatprep.subr.mxu0 0.0
    %1266 = vmatpush1.msra.mxu0 0.0
    %1267 = vmatprep.subr.mxu0 0.0
    %1268 = vmatpush1.msra.mxu0 0.0
    %1269 = vmatprep.subr.mxu0 0.0
    %1270 = vmatpush1.msra.mxu0 0.0
    %1271 = vmatprep.subr.mxu0 0.0
    %1272 = vmatpush1.msra.mxu0 0.0
    %1273 = vmatprep.subr.mxu0 0.0
    %1274 = vmatpush1.msra.mxu0 0.0
    %1275 = vmatprep.subr.mxu0 0.0
    %1276 = vmatpush1.msra.mxu0 0.0
    %1277 = vmatprep.subr.mxu0 0.0
    %1278 = vmatpush1.msra.mxu0 0.0
    %1279 = vmatprep.subr.mxu0 0.0
    %1280 = vmatpush1.msra.mxu0 0.0
    %1281 = vmatprep.subr.mxu0 0.0
    %1282 = vmatpush1.msra.mxu0 0.0
    %1283 = vmatprep.subr.mxu0 0.0
    %1284 = vmatpush1.msra.mxu0 0.0
    %1285 = vmatprep.subr.mxu0 0.0
    %1286 = vmatpush1.msra.mxu0 0.0
    %1287 = vmatprep.subr.mxu0 0.0
    %1288 = vmatpush1.msra.mxu0 0.0
    %1289 = vmatprep.subr.mxu0 0.0
    %1290 = vmatpush1.msra.mxu0 0.0
    %1291 = vmatprep.subr.mxu0 0.0
    %1292 = vmatpush1.msra.mxu0 0.0
    %1293 = vmatprep.subr.mxu0 0.0
    %1294 = vmatpush1.msra.mxu0 %v50
    %1295 = vmatprep.subr.mxu0 0.0
    %1296 = vmatpush2.msra.mxu0 0.0
    %1297 = vmatprep.subr.mxu0 0.0
    %1298 = vmatpush2.msra.mxu0 0.0
    %1299 = vmatprep.subr.mxu0 0.0
    %1300 = vmatpush2.msra.mxu0 0.0
    %1301 = vmatprep.subr.mxu0 0.0
    %1302 = vmatpush2.msra.mxu0 0.0
    %1303 = vmatprep.subr.mxu0 0.0
    %1304 = vmatpush2.msra.mxu0 0.0
    %1305 = vmatprep.subr.mxu0 0.0
    %1306 = vmatpush2.msra.mxu0 0.0
    %1307 = vmatprep.subr.mxu0 0.0
    %1308 = vmatpush2.msra.mxu0 0.0
    %1309 = vmatprep.subr.mxu0 0.0
    %1310 = vmatpush2.msra.mxu0 0.0
    %1311 = vmatprep.subr.mxu0 0.0
    %1312 = vmatpush2.msra.mxu0 0.0
    %1313 = vmatprep.subr.mxu0 0.0
    %1314 = vmatpush2.msra.mxu0 0.0
    %1315 = vmatprep.subr.mxu0 0.0
    %1316 = vmatpush2.msra.mxu0 0.0
    %1317 = vmatprep.subr.mxu0 0.0
    %1318 = vmatpush2.msra.mxu0 0.0
    %1319 = vmatprep.subr.mxu0 0.0
    %1320 = vmatpush2.msra.mxu0 0.0
    %1321 = vmatprep.subr.mxu0 0.0
    %1322 = vmatpush2.msra.mxu0 0.0
    %1323 = vmatprep.subr.mxu0 0.0
    %1324 = vmatpush2.msra.mxu0 0.0
    %1325 = vmatprep.subr.mxu0 0.0
    %1326 = vmatpush2.msra.mxu0 0.0
    %1327 = vmatprep.mubr.f32.mxu0 0.0
    %1328 = vmatmul.mubr.f32.gmra.mxu0 %v1261
    %v1329 = vpop.f32.mrf.mxu0
    %v1330 = vadd.f32 0.0, %v1329
    %v1331 = vpop.f32.mrf.mxu0
    %1332 = vdwg.mxu0
    %1333 = vst.msk [vmem:[#allocation2] sm:$0xff] %vm51, %v819
    %1334 = vst.msk [vmem:[#allocation2 + $0x8] sm:$0xff] %vm51, %v892
    %1335 = vst.msk [vmem:[#allocation2 + $0x10] sm:$0xff] %vm51, %v965
    %1336 = vst.msk [vmem:[#allocation2 + $0x18] sm:$0xff] %vm51, %v1038
    %1337 = vst.msk [vmem:[#allocation2 + $0x20] sm:$0xff] %vm51, %v1111
    %1338 = vst.msk [vmem:[#allocation2 + $0x28] sm:$0xff] %vm51, %v1184
    %1339 = vst.msk [vmem:[#allocation2 + $0x30] sm:$0xff] %vm51, %v1257
    %1340 = vst.msk [vmem:[#allocation2 + $0x38] sm:$0xff] %vm51, %v1330
    // Predicated region
    $region14: #{tpu_custom_call.1} parent=1 // pred_check
      _
    $region15: #{tpu_custom_call.1} parent=1 // pred_check_branch
      %1342 = sbr.rel (0) target = $region17
    $region16: #{tpu_custom_call.1} parent=1 // pred_region
      %s1344 = ssub.s32 1024, 1024
      %1345 = vsyncadd [#allocation3], %s1344
      %s1346 = sshll.u32 [#allocation2], 4
      %s1347 = int_to_ptr.vmem [resolvable:$true] %s1346
      %1352 = dma.vmem_to_hbm [thread:$0]  %s1347, 1024, %s3, [#allocation3], 128, 128, 8
    $region17: #{tpu_custom_call.1} parent=1 // pred_fallthru
      _
    // Predicated region
    $region18: #{tpu_custom_call.1} parent=1 // pred_check
      _
    $region19: #{tpu_custom_call.1} parent=1 // pred_check_branch
      %1354 = sbr.rel (0) target = $region21
    $region20: #{tpu_custom_call.1} parent=1 // pred_region
      %s1356 = ssub.s32 1024, 1024
      %1357 = vsyncadd [#allocation5], %s1356
      %s1358 = sshll.u32 [#allocation4], 4
      %s1359 = int_to_ptr.vmem [resolvable:$true] %s1358
      %1364 = dma.vmem_to_hbm [thread:$0]  %s1359, 1024, %s4, [#allocation5], 128, 128, 8
    $region21: #{tpu_custom_call.1} parent=1 // pred_fallthru
      _
    // Predicated region
    $region22: #{tpu_custom_call.1} parent=1 // pred_check
      _
    $region23: #{tpu_custom_call.1} parent=1 // pred_check_branch
      %1366 = sbr.rel (0) target = $region25
    $region24: #{tpu_custom_call.1} parent=1 // pred_region
      %s1368 = ssub.s32 1024, 1024
      %1369 = vsyncadd [#allocation5], %s1368
      %s1370 = sshll.u32 [#allocation6], 4
      %s1371 = int_to_ptr.vmem [resolvable:$true] %s1370
      %1376 = dma.vmem_to_hbm [thread:$0]  %s1371, 1024, %s5, [#allocation5], 128, 128, 8
    $region25: #{tpu_custom_call.1} parent=1 // pred_fallthru
      _
    // Predicated region
    $region26: #{tpu_custom_call.1} parent=1 // pred_check
      _
    $region27: #{tpu_custom_call.1} parent=1 // pred_check_branch
      %1378 = sbr.rel (0) target = $region29
    $region28: #{tpu_custom_call.1} parent=1 // pred_region
      %1379 = dma.done [#allocation3], 1024
    $region29: #{tpu_custom_call.1} parent=1 // pred_fallthru
      _
    // Predicated region
    $region30: #{tpu_custom_call.1} parent=1 // pred_check
      _
    $region31: #{tpu_custom_call.1} parent=1 // pred_check_branch
      %1381 = sbr.rel (0) target = $region33
    $region32: #{tpu_custom_call.1} parent=1 // pred_region
      %1382 = dma.done [#allocation5], 1024
    $region33: #{tpu_custom_call.1} parent=1 // pred_fallthru
      _
    // Predicated region
    $region34: #{tpu_custom_call.1} parent=1 // pred_check
      _
    $region35: #{tpu_custom_call.1} parent=1 // pred_check_branch
      %1384 = sbr.rel (0) target = $region37
    $region36: #{tpu_custom_call.1} parent=1 // pred_region
      %1385 = dma.done [#allocation5], 1024
    $region37: #{tpu_custom_call.1} parent=1 // pred_fallthru
      _
    %1386 = vsyncpa [#allocation3], 1
    %1387 = vsyncpa [#allocation5], 1

</llo_original>
